<compile_context>
chip_gen: v5e
topology: v5e:2x2
jax: 0.10.0
libtpu: 0.0.40
codegen_flags: <defaults>
</compile_context>

<pallas_src>
import jax
import jax.numpy as jnp
from jax.experimental import pallas as pl
from jax.experimental.pallas import tpu as pltpu

_MLP_DTYPE = jnp.bfloat16   # MXU dtype for the epilogue matmuls (f32 accumulate)


def _round_up(x, m):
    return (x + m - 1) // m * m


def _cdiv(a, b):
    return -(-a // b)


def _pick_tile_b(B, max_tile, min_tiles):
    """Multiple-of-8 batch tile: minimize batch padding first, then prefer the
    largest tile; honor min_tiles (megacore sharding) whenever B allows."""
    b8 = _round_up(max(B, 1), 8)
    max_tile = max(8, min(max_tile, b8))
    best = None
    for tb in range(8, max_tile + 1, 8):
        bp = _round_up(b8, tb)
        if bp // tb < min_tiles and tb > 8:
            continue
        key = (bp - b8, -tb)
        if best is None or key < best[0]:
            best = (key, tb, bp)
    return best[1], best[2]


def _audio_only_kernel(x_ref, w1_ref, b1_ref, w2_ref, b2_ref,
                       w3_ref, b3_ref, w4_ref, b4_ref, o_ref, acc_ref):
    t = pl.program_id(1)

    @pl.when(t == 0)
    def _():
        acc_ref[...] = jnp.zeros_like(acc_ref)

    # Hot loop: x block is (tile_b, tile_t8, 8, DL). Reducing axis=1 (a
    # non-minor dim) is pure vreg adds into the (tile_b, 8, DL) accumulator;
    # no cross-sublane work per step.
    acc_ref[...] += jnp.sum(x_ref[...].astype(jnp.float32), axis=1)

    @pl.when(t == pl.num_programs(1) - 1)
    def _():
        # One cross-sublane reduce per batch tile. 1/T and BN(eval) are folded
        # into w1/b1, so the sum is the correct layer-1 input.
        emb = jnp.sum(acc_ref[...], axis=1)                       # (tile_b, DL) f32

        def mm(a, w_ref):
            return jnp.dot(a.astype(w_ref.dtype), w_ref[...],
                           preferred_element_type=jnp.float32)

        # Linear(D,512) (+ folded BN + 1/T) -> ReLU   (Dropout = id in eval)
        h = mm(emb, w1_ref) + b1_ref[...]
        h = jnp.maximum(h, 0.0)
        # Linear(512,256)
        h = mm(h, w2_ref) + b2_ref[...]
        # Linear(256,128) -> ReLU
        h = mm(h, w3_ref) + b3_ref[...]
        h = jnp.maximum(h, 0.0)
        # Linear(128, C_padded)
        out = mm(h, w4_ref) + b4_ref[...]
        o_ref[...] = out.astype(o_ref.dtype)


def _audio_only_impl(audio_feat, params):
    """audio_feat: (B, T, D). params: dict of PyTorch-shaped tensors."""
    B, T, D = audio_feat.shape
    eps = 1e-5
    f32 = jnp.float32
    itemsize = jnp.dtype(audio_feat.dtype).itemsize

    # ---- fold BN (eval running stats) + 1/T of the mean + bias into layer 1 ----
    bn_scale = params["bn_gamma"] / jnp.sqrt(params["bn_var"] + eps)       # (512,)
    bn_shift = params["bn_beta"] - params["bn_mean"] * bn_scale            # (512,)
    w1 = params["w1"].T.astype(f32) * bn_scale[None, :] * (1.0 / T)        # (D, 512)
    b1 = (params["b1"] * bn_scale + bn_shift).reshape(1, -1).astype(f32)   # (1, 512)
    w2 = params["w2"].T.astype(f32); b2 = params["b2"].reshape(1, -1).astype(f32)
    w3 = params["w3"].T.astype(f32); b3 = params["b3"].reshape(1, -1).astype(f32)
    w4 = params["w4"].T.astype(f32); b4 = params["b4"].reshape(1, -1).astype(f32)
    C = w4.shape[1]

    # ---- per-generation budgets (64 MiB VMEM -> v7x-style caps, else v5e/v6e) ----
    try:
        vmem_cap = int(pltpu.get_tpu_info().vmem_capacity_bytes)
    except Exception:
        vmem_cap = 64 << 20                       # conservative (v7x-safe) default
    big_vmem = vmem_cap >= (100 << 20)            # v5e / v6e: 128 MiB
    x_budget = (16 << 20) if big_vmem else (8 << 20)      # per x block (2x buffered)
    vmem_cap_limit = (96 << 20) if big_vmem else (48 << 20)

    # ---- lane-dense feature axis ----
    if D < 128 and 128 % D == 0:
        pack, Dp0 = 128 // D, D                   # free reshape-pack: lane dim = 128
    else:
        pack, Dp0 = 1, _round_up(D, 128)          # zero-pad D up to 128 lanes
    DL = pack * Dp0

    # layer-1 weight rows matched to the packed / padded lane layout
    if pack > 1:
        w1p = jnp.concatenate([w1] * pack, axis=0)          # (DL, 512), row dd -> w1[dd % D]
    elif Dp0 != D:
        w1p = jnp.pad(w1, ((0, Dp0 - D), (0, 0)))           # zero rows for padded lanes
    else:
        w1p = w1

    # lane-dense output: pad class dim up to a multiple of 128
    Cp = _round_up(C, 128)
    w4p = jnp.pad(w4, ((0, 0), (0, Cp - C))) if Cp != C else w4
    b4p = jnp.pad(b4, ((0, 0), (0, Cp - C))) if Cp != C else b4

    # ---- batch tile: minimize padding; keep >=2 tiles on 2-TC (v7x) parts ----
    max_tb_budget = max(8, (x_budget // (8 * DL * itemsize)) // 8 * 8)
    max_tb = min(256 if (big_vmem and B >= 256) else 128, max_tb_budget)
    min_tiles = 1 if big_vmem else 2
    tile_b, Bp = _pick_tile_b(B, max_tb, min_tiles)

    # ---- time tiling in groups of 8 packed rows (sublane-aligned blocks) ----
    T8_need = _cdiv(T, 8 * pack)                          # 8-row groups covering T
    max_t8 = max(1, x_budget // (tile_b * 8 * DL * itemsize))
    tile_t8 = min(max_t8, T8_need)
    T8 = _round_up(T8_need, tile_t8)
    nt = T8 // tile_t8
    nb = Bp // tile_b
    T_total = T8 * 8 * pack

    # ---- single combined pad (zero frames/rows/features are sum-safe) ----
    pad_b, pad_t, pad_d = Bp - B, T_total - T, Dp0 - D
    x = audio_feat
    if pad_b or pad_t or pad_d:
        x = jnp.pad(x, ((0, pad_b), (0, pad_t), (0, pad_d)))
    # pure bitcast reshape: (Bp, T_total, Dp0) -> (Bp, T8, 8, DL)
    x = x.reshape(Bp, T8, 8, DL)

    # cast MLP weights once for single-pass bf16 MXU matmuls (biases stay f32)
    w1k = w1p.astype(_MLP_DTYPE)
    w2k = w2.astype(_MLP_DTYPE)
    w3k = w3.astype(_MLP_DTYPE)
    w4k = w4p.astype(_MLP_DTYPE)

    def const(arr):
        return pl.BlockSpec(arr.shape, lambda i, t: (0, 0))

    in_specs = [
        pl.BlockSpec((tile_b, tile_t8, 8, DL), lambda i, t: (i, t, 0, 0)),
        const(w1k), const(b1), const(w2k), const(b2),
        const(w3k), const(b3), const(w4k), const(b4p),
    ]
    out_specs = pl.BlockSpec((tile_b, Cp), lambda i, t: (i, 0))

    # VMEM budget from the real block sizes.
    x_blk = tile_b * tile_t8 * 8 * DL * itemsize
    w_bytes = sum(int(a.size) * a.dtype.itemsize
                  for a in (w1k, b1, w2k, b2, w3k, b3, w4k, b4p))
    acc_bytes = tile_b * 8 * DL * 4
    need = 2 * x_blk + 2 * w_bytes + 2 * tile_b * Cp * 4 + acc_bytes + (2 << 20)
    vmem = int(min(vmem_cap_limit, max(need, 16 << 20)))

    flops = 2 * B * (T * D + D * 512 + 512 * 256 + 256 * 128 + 128 * C)
    bytes_accessed = int(x.size) * itemsize + w_bytes + Bp * Cp * 4
    cost = pl.CostEstimate(flops=int(flops), transcendentals=0,
                           bytes_accessed=int(bytes_accessed))

    out = pl.pallas_call(
        _audio_only_kernel,
        out_shape=jax.ShapeDtypeStruct((Bp, Cp), jnp.float32),
        grid_spec=pltpu.PrefetchScalarGridSpec(
            num_scalar_prefetch=0,
            grid=(nb, nt),
            in_specs=in_specs,
            out_specs=out_specs,
            scratch_shapes=[pltpu.VMEM((tile_b, 8, DL), jnp.float32)],
        ),
        compiler_params=pltpu.CompilerParams(
            dimension_semantics=("parallel", "arbitrary"),
            vmem_limit_bytes=vmem),
        cost_estimate=cost,
    )(x, w1k, b1, w2k, b2, w3k, b3, w4k, b4p)

    return out[:B, :C]


# jit the wrapper so the (optional) pad + bitcast reshape fuse and no extra
# HBM passes over the (B,T,D) stream are materialized eagerly.
audio_only_forward = jax.jit(_audio_only_impl)


def init_params(key, audio_emb_dim, num_classes):
    ks = jax.random.split(key, 12)
    sc = 0.05
    return {
        "w1": sc * jax.random.normal(ks[0], (512, audio_emb_dim), jnp.float32),
        "b1": sc * jax.random.normal(ks[1], (512,), jnp.float32),
        "bn_gamma": 1.0 + 0.1 * jax.random.normal(ks[2], (512,), jnp.float32),
        "bn_beta": 0.1 * jax.random.normal(ks[3], (512,), jnp.float32),
        "bn_mean": 0.1 * jax.random.normal(ks[4], (512,), jnp.float32),
        "bn_var": jnp.abs(1.0 + 0.1 * jax.random.normal(ks[5], (512,), jnp.float32)),
        "w2": sc * jax.random.normal(ks[6], (256, 512), jnp.float32),
        "b2": sc * jax.random.normal(ks[7], (256,), jnp.float32),
        "w3": sc * jax.random.normal(ks[8], (128, 256), jnp.float32),
        "b3": sc * jax.random.normal(ks[9], (128,), jnp.float32),
        "w4": sc * jax.random.normal(ks[10], (num_classes, 128), jnp.float32),
        "b4": sc * jax.random.normal(ks[11], (num_classes,), jnp.float32),
    }


def reference_forward(audio_feat, params):
    """Pure-JAX f32 reference (eval-mode PyTorch semantics)."""
    eps = 1e-5
    emb = jnp.mean(audio_feat, axis=1)
    h = emb @ params["w1"].T + params["b1"]
    h = (h - params["bn_mean"]) / jnp.sqrt(params["bn_var"] + eps)
    h = h * params["bn_gamma"] + params["bn_beta"]
    h = jnp.maximum(h, 0.0)
    h = h @ params["w2"].T + params["b2"]
    h = h @ params["w3"].T + params["b3"]
    h = jnp.maximum(h, 0.0)
    return h @ params["w4"].T + params["b4"]


if __name__ == "__main__":
    key = jax.random.PRNGKey(0)
    k_x, k_p = jax.random.split(key)

    B, T, audio_emb_dim, num_classes = 8, 8, 64, 10
    audio_feat = jax.random.normal(k_x, (B, T, audio_emb_dim), jnp.float32)
    params = init_params(k_p, audio_emb_dim, num_classes)

    out = audio_only_forward(audio_feat, params)
    out = jax.block_until_ready(out)
    assert out.shape == (B, num_classes)

    # f32 reference; kernel streams f32 and accumulates in f32, only the MLP
    # weights/activations ride the MXU in bf16 -> small tolerance.
    ref = reference_forward(audio_feat, params)
    max_diff = float(jnp.max(jnp.abs(out - ref)))
    assert jnp.allclose(out, ref, atol=1e-2, rtol=1e-2), f"mismatch, max|d|={max_diff}"

    print("KERNEL_OK")
</pallas_src>

<mosaic_0001>
module attributes {stable_mosaic.version = 11 : i64} {
  func.func @_audio_only_kernel(%arg0: i32, %arg1: i32, %arg2: memref<8x1x8x128xf32, #tpu.memory_space<vmem>>, %arg3: memref<128x512xbf16, #tpu.memory_space<vmem>>, %arg4: memref<1x512xf32, #tpu.memory_space<vmem>>, %arg5: memref<512x256xbf16, #tpu.memory_space<vmem>>, %arg6: memref<1x256xf32, #tpu.memory_space<vmem>>, %arg7: memref<256x128xbf16, #tpu.memory_space<vmem>>, %arg8: memref<1x128xf32, #tpu.memory_space<vmem>>, %arg9: memref<128x128xbf16, #tpu.memory_space<vmem>>, %arg10: memref<1x128xf32, #tpu.memory_space<vmem>>, %arg11: memref<8x128xf32, #tpu.memory_space<vmem>>, %arg12: memref<8x8x128xf32, #tpu.memory_space<vmem>>) attributes {dimension_semantics = [#tpu.dimension_semantics<parallel>, #tpu.dimension_semantics<arbitrary>], iteration_bounds = array<i64: 1, 1>, scalar_prefetch = 0 : i64, scratch_operands = 1 : i64, tpu.core_type = #tpu.core_type<tc>, window_params = [{transform_indices = @transform_0, window_bounds = array<i64: 8, 1, 8, 128>}, {pipeline_mode = #tpu.pipeline_mode<synchronous>, transform_indices = @transform_1, window_bounds = array<i64: 128, 512>}, {pipeline_mode = #tpu.pipeline_mode<synchronous>, transform_indices = @transform_2, window_bounds = array<i64: 1, 512>}, {pipeline_mode = #tpu.pipeline_mode<synchronous>, transform_indices = @transform_3, window_bounds = array<i64: 512, 256>}, {pipeline_mode = #tpu.pipeline_mode<synchronous>, transform_indices = @transform_4, window_bounds = array<i64: 1, 256>}, {pipeline_mode = #tpu.pipeline_mode<synchronous>, transform_indices = @transform_5, window_bounds = array<i64: 256, 128>}, {pipeline_mode = #tpu.pipeline_mode<synchronous>, transform_indices = @transform_6, window_bounds = array<i64: 1, 128>}, {pipeline_mode = #tpu.pipeline_mode<synchronous>, transform_indices = @transform_7, window_bounds = array<i64: 128, 128>}, {pipeline_mode = #tpu.pipeline_mode<synchronous>, transform_indices = @transform_8, window_bounds = array<i64: 1, 128>}, {transform_indices = @transform_9, window_bounds = array<i64: 8, 128>}]} {
    %c0_i32 = arith.constant 0 : i32
    %0 = arith.cmpi eq, %arg1, %c0_i32 : i32
    %1 = arith.extui %0 : i1 to i32
    %c0_i32_0 = arith.constant 0 : i32
    %2 = arith.cmpi ne, %1, %c0_i32_0 : i32
    scf.if %2 {
      %cst_12 = arith.constant 0.000000e+00 : f32
      %11 = vector.broadcast %cst_12 : f32 to vector<8x8x128xf32>
      %c0_13 = arith.constant 0 : index
      %c0_14 = arith.constant 0 : index
      %c0_15 = arith.constant 0 : index
      %12 = vector.load %arg12[%c0_13, %c0_14, %c0_15] : memref<8x8x128xf32, #tpu.memory_space<vmem>>, vector<8x8x128xf32>
      tpu.vector_store %arg12[%c0_13, %c0_14, %c0_15], %11 {strides = array<i32>} : memref<8x8x128xf32, #tpu.memory_space<vmem>>, vector<8x8x128xf32>,
    } else {
    }
    %c0 = arith.constant 0 : index
    %c0_1 = arith.constant 0 : index
    %c0_2 = arith.constant 0 : index
    %3 = vector.load %arg12[%c0, %c0_1, %c0_2] : memref<8x8x128xf32, #tpu.memory_space<vmem>>, vector<8x8x128xf32>
    %c0_3 = arith.constant 0 : index
    %c0_4 = arith.constant 0 : index
    %c0_5 = arith.constant 0 : index
    %c0_6 = arith.constant 0 : index
    %4 = vector.load %arg2[%c0_3, %c0_4, %c0_5, %c0_6] : memref<8x1x8x128xf32, #tpu.memory_space<vmem>>, vector<8x1x8x128xf32>
    %cst = arith.constant dense<0.000000e+00> : vector<8x8x128xf32>
    %5 = vector.multi_reduction <add>, %4, %cst [1] : vector<8x1x8x128xf32> to vector<8x8x128xf32>
    %6 = arith.addf %3, %5 : vector<8x8x128xf32>
    %c0_7 = arith.constant 0 : index
    %c0_8 = arith.constant 0 : index
    %c0_9 = arith.constant 0 : index
    %7 = vector.load %arg12[%c0_7, %c0_8, %c0_9] : memref<8x8x128xf32, #tpu.memory_space<vmem>>, vector<8x8x128xf32>
    tpu.vector_store %arg12[%c0_7, %c0_8, %c0_9], %6 {strides = array<i32>} : memref<8x8x128xf32, #tpu.memory_space<vmem>>, vector<8x8x128xf32>,
    %c0_i32_10 = arith.constant 0 : i32
    %8 = arith.cmpi eq, %arg1, %c0_i32_10 : i32
    %9 = arith.extui %8 : i1 to i32
    %c0_i32_11 = arith.constant 0 : i32
    %10 = arith.cmpi ne, %9, %c0_i32_11 : i32
    scf.if %10 {
      %c0_12 = arith.constant 0 : index
      %c0_13 = arith.constant 0 : index
      %c0_14 = arith.constant 0 : index
      %11 = vector.load %arg12[%c0_12, %c0_13, %c0_14] : memref<8x8x128xf32, #tpu.memory_space<vmem>>, vector<8x8x128xf32>
      %cst_15 = arith.constant dense<0.000000e+00> : vector<8x128xf32>
      %12 = vector.multi_reduction <add>, %11, %cst_15 [1] : vector<8x8x128xf32> to vector<8x128xf32>
      %13 = arith.truncf %12 : vector<8x128xf32> to vector<8x128xbf16>
      %c0_16 = arith.constant 0 : index
      %c0_17 = arith.constant 0 : index
      %14 = vector.load %arg3[%c0_16, %c0_17] : memref<128x512xbf16, #tpu.memory_space<vmem>>, vector<128x512xbf16>
      %cst_18 = arith.constant dense<0.000000e+00> : vector<8x512xf32>
      %15 = tpu.matmul %13, %14, %cst_18 {dimension_numbers = #tpu.dot_dimension_numbers<[1], [0], [0], [1], [0, 0, 1, 1], [], []>} : vector<8x128xbf16>, vector<128x512xbf16>, vector<8x512xf32> -> vector<8x512xf32>
      %c0_19 = arith.constant 0 : index
      %c0_20 = arith.constant 0 : index
      %16 = vector.load %arg4[%c0_19, %c0_20] : memref<1x512xf32, #tpu.memory_space<vmem>>, vector<1x512xf32>
      %17 = vector.broadcast %16 : vector<1x512xf32> to vector<8x512xf32>
      %18 = arith.addf %15, %17 : vector<8x512xf32>
      %cst_21 = arith.constant 0.000000e+00 : f32
      %19 = vector.broadcast %cst_21 : f32 to vector<8x512xf32>
      %20 = arith.maximumf %18, %19 : vector<8x512xf32>
      %21 = arith.truncf %20 : vector<8x512xf32> to vector<8x512xbf16>
      %c0_22 = arith.constant 0 : index
      %c0_23 = arith.constant 0 : index
      %22 = vector.load %arg5[%c0_22, %c0_23] : memref<512x256xbf16, #tpu.memory_space<vmem>>, vector<512x256xbf16>
      %cst_24 = arith.constant dense<0.000000e+00> : vector<8x256xf32>
      %23 = tpu.matmul %21, %22, %cst_24 {dimension_numbers = #tpu.dot_dimension_numbers<[1], [0], [0], [1], [0, 0, 1, 1], [], []>} : vector<8x512xbf16>, vector<512x256xbf16>, vector<8x256xf32> -> vector<8x256xf32>
      %c0_25 = arith.constant 0 : index
      %c0_26 = arith.constant 0 : index
      %24 = vector.load %arg6[%c0_25, %c0_26] : memref<1x256xf32, #tpu.memory_space<vmem>>, vector<1x256xf32>
      %25 = vector.broadcast %24 : vector<1x256xf32> to vector<8x256xf32>
      %26 = arith.addf %23, %25 : vector<8x256xf32>
      %27 = arith.truncf %26 : vector<8x256xf32> to vector<8x256xbf16>
      %c0_27 = arith.constant 0 : index
      %c0_28 = arith.constant 0 : index
      %28 = vector.load %arg7[%c0_27, %c0_28] : memref<256x128xbf16, #tpu.memory_space<vmem>>, vector<256x128xbf16>
      %cst_29 = arith.constant dense<0.000000e+00> : vector<8x128xf32>
      %29 = tpu.matmul %27, %28, %cst_29 {dimension_numbers = #tpu.dot_dimension_numbers<[1], [0], [0], [1], [0, 0, 1, 1], [], []>} : vector<8x256xbf16>, vector<256x128xbf16>, vector<8x128xf32> -> vector<8x128xf32>
      %c0_30 = arith.constant 0 : index
      %c0_31 = arith.constant 0 : index
      %30 = vector.load %arg8[%c0_30, %c0_31] : memref<1x128xf32, #tpu.memory_space<vmem>>, vector<1x128xf32>
      %31 = vector.broadcast %30 : vector<1x128xf32> to vector<8x128xf32>
      %32 = arith.addf %29, %31 : vector<8x128xf32>
      %cst_32 = arith.constant 0.000000e+00 : f32
      %33 = vector.broadcast %cst_32 : f32 to vector<8x128xf32>
      %34 = arith.maximumf %32, %33 : vector<8x128xf32>
      %35 = arith.truncf %34 : vector<8x128xf32> to vector<8x128xbf16>
      %c0_33 = arith.constant 0 : index
      %c0_34 = arith.constant 0 : index
      %36 = vector.load %arg9[%c0_33, %c0_34] : memref<128x128xbf16, #tpu.memory_space<vmem>>, vector<128x128xbf16>
      %cst_35 = arith.constant dense<0.000000e+00> : vector<8x128xf32>
      %37 = tpu.matmul %35, %36, %cst_35 {dimension_numbers = #tpu.dot_dimension_numbers<[1], [0], [0], [1], [0, 0, 1, 1], [], []>} : vector<8x128xbf16>, vector<128x128xbf16>, vector<8x128xf32> -> vector<8x128xf32>
      %c0_36 = arith.constant 0 : index
      %c0_37 = arith.constant 0 : index
      %38 = vector.load %arg10[%c0_36, %c0_37] : memref<1x128xf32, #tpu.memory_space<vmem>>, vector<1x128xf32>
      %39 = vector.broadcast %38 : vector<1x128xf32> to vector<8x128xf32>
      %40 = arith.addf %37, %39 : vector<8x128xf32>
      %c0_38 = arith.constant 0 : index
      %c0_39 = arith.constant 0 : index
      %41 = vector.load %arg11[%c0_38, %c0_39] : memref<8x128xf32, #tpu.memory_space<vmem>>, vector<8x128xf32>
      tpu.vector_store %arg11[%c0_38, %c0_39], %40 {strides = array<i32>} : memref<8x128xf32, #tpu.memory_space<vmem>>, vector<8x128xf32>,
    } else {
    }
    return
  }
  func.func @transform_0(%arg0: i32, %arg1: i32) -> (i32, i32, i32, i32) {
    %c0_i32 = arith.constant 0 : i32
    %c0_i32_0 = arith.constant 0 : i32
    %c0_i32_1 = arith.constant 0 : i32
    return %arg0, %arg1, %c0_i32, %c0_i32_0 : i32, i32, i32, i32
  }
  func.func @transform_1(%arg0: i32, %arg1: i32) -> (i32, i32) {
    %c0_i32 = arith.constant 0 : i32
    %c0_i32_0 = arith.constant 0 : i32
    %c0_i32_1 = arith.constant 0 : i32
    return %c0_i32, %c0_i32_0 : i32, i32
  }
  func.func @transform_2(%arg0: i32, %arg1: i32) -> (i32, i32) {
    %c0_i32 = arith.constant 0 : i32
    %c0_i32_0 = arith.constant 0 : i32
    %c0_i32_1 = arith.constant 0 : i32
    return %c0_i32, %c0_i32_0 : i32, i32
  }
  func.func @transform_3(%arg0: i32, %arg1: i32) -> (i32, i32) {
    %c0_i32 = arith.constant 0 : i32
    %c0_i32_0 = arith.constant 0 : i32
    %c0_i32_1 = arith.constant 0 : i32
    return %c0_i32, %c0_i32_0 : i32, i32
  }
  func.func @transform_4(%arg0: i32, %arg1: i32) -> (i32, i32) {
    %c0_i32 = arith.constant 0 : i32
    %c0_i32_0 = arith.constant 0 : i32
    %c0_i32_1 = arith.constant 0 : i32
    return %c0_i32, %c0_i32_0 : i32, i32
  }
  func.func @transform_5(%arg0: i32, %arg1: i32) -> (i32, i32) {
    %c0_i32 = arith.constant 0 : i32
    %c0_i32_0 = arith.constant 0 : i32
    %c0_i32_1 = arith.constant 0 : i32
    return %c0_i32, %c0_i32_0 : i32, i32
  }
  func.func @transform_6(%arg0: i32, %arg1: i32) -> (i32, i32) {
    %c0_i32 = arith.constant 0 : i32
    %c0_i32_0 = arith.constant 0 : i32
    %c0_i32_1 = arith.constant 0 : i32
    return %c0_i32, %c0_i32_0 : i32, i32
  }
  func.func @transform_7(%arg0: i32, %arg1: i32) -> (i32, i32) {
    %c0_i32 = arith.constant 0 : i32
    %c0_i32_0 = arith.constant 0 : i32
    %c0_i32_1 = arith.constant 0 : i32
    return %c0_i32, %c0_i32_0 : i32, i32
  }
  func.func @transform_8(%arg0: i32, %arg1: i32) -> (i32, i32) {
    %c0_i32 = arith.constant 0 : i32
    %c0_i32_0 = arith.constant 0 : i32
    %c0_i32_1 = arith.constant 0 : i32
    return %c0_i32, %c0_i32_0 : i32, i32
  }
  func.func @transform_9(%arg0: i32, %arg1: i32) -> (i32, i32) {
    %c0_i32 = arith.constant 0 : i32
    %c0_i32_0 = arith.constant 0 : i32
    return %arg0, %c0_i32 : i32, i32
  }
}

</mosaic_0001>

<llo_original>
// kernel: _audio_only_impl.1
$region0: #{_audio_only_impl.1}
  #allocation0 [shape = 'u32[]', space=smem, size = 0x4, offset = 0x4, fixed_abs, tag = 'smem constant byte address 0x4 - core index']
  #allocation1 [shape = 'u32[72,128]{1,0:T(1,128)}', space=vmem, size = 0x9000, scoped, tag = 'internal scratch']
  #allocation2 [shape = 'f32[8,8,128]{2,1,0:T(8,128)}', space=vmem, size = 0x8000, scoped, tag = 'scratch operand']
  %s0 = inlined_call_operand.vmem [shape: f32[8,1,8,128], index: 0, kind: input, shape index: {}]
  %s1 = inlined_call_operand.vmem [shape: bf16[128,512], index: 1, kind: input, shape index: {}]
  %s2 = inlined_call_operand.vmem [shape: f32[1,512], index: 2, kind: input, shape index: {}]
  %s3 = inlined_call_operand.vmem [shape: bf16[512,256], index: 3, kind: input, shape index: {}]
  %s4 = inlined_call_operand.vmem [shape: f32[1,256], index: 4, kind: input, shape index: {}]
  %s5 = inlined_call_operand.vmem [shape: bf16[256,128], index: 5, kind: input, shape index: {}]
  %s6 = inlined_call_operand.vmem [shape: f32[1,128], index: 6, kind: input, shape index: {}]
  %s7 = inlined_call_operand.vmem [shape: bf16[128,128], index: 7, kind: input, shape index: {}]
  %s8 = inlined_call_operand.vmem [shape: f32[1,128], index: 8, kind: input, shape index: {}]
  %s9 = inlined_call_operand.hbm [shape: f32[8,128], index: 9, kind: output, shape index: {}]
  %s10 = sld [smem:[#allocation0]]
  $region54: #{_audio_only_impl.1} parent=0
    _
  %s12 = ssub.s32 1, %s10
  %s13 = scalar_select 0, %s12, %s10
  $region1: #{_audio_only_impl.1} parent=0
    #allocation3 [shape = 'u8[4096]{0}', space=vmem, size = 0x1000, scoped, tag = 'output window, operand 0, single buffered']
    #allocation4 [shape = 's32[1]{0}', space=sflag, size = 0x4, scoped, tag = 'scoped memory for _audio_only_impl.1']
    %14 = vsyncpa [#allocation4], 0
    // Predicated region
    $region2: #{_audio_only_impl.1} parent=1 // pred_check
      _
    $region3: #{_audio_only_impl.1} parent=1 // pred_check_branch
      %16 = sbr.rel (0) target = $region5
    $region4: #{_audio_only_impl.1} parent=1 // pred_region
      _
    $region5: #{_audio_only_impl.1} parent=1 // pred_fallthru
      _
    // Predicated region
    $region6: #{_audio_only_impl.1} parent=1 // pred_check
      _
    $region7: #{_audio_only_impl.1} parent=1 // pred_check_branch
      %18 = sbr.rel (0) target = $region9
    $region8: #{_audio_only_impl.1} parent=1 // pred_region
      _
    $region9: #{_audio_only_impl.1} parent=1 // pred_fallthru
      _
    // Predicated region
    $region10: #{_audio_only_impl.1} parent=1 // pred_check
      _
    $region11: #{_audio_only_impl.1} parent=1 // pred_check_branch
      %20 = sbr.rel (0) target = $region13
    $region12: #{_audio_only_impl.1} parent=1 // pred_region
      _
    $region13: #{_audio_only_impl.1} parent=1 // pred_fallthru
      _
    // Predicated region
    $region14: #{_audio_only_impl.1} parent=1 // pred_check
      _
    $region15: #{_audio_only_impl.1} parent=1 // pred_check_branch
      %22 = sbr.rel (0) target = $region17
    $region16: #{_audio_only_impl.1} parent=1 // pred_region
      _
    $region17: #{_audio_only_impl.1} parent=1 // pred_fallthru
      _
    // Predicated region
    $region18: #{_audio_only_impl.1} parent=1 // pred_check
      _
    $region19: #{_audio_only_impl.1} parent=1 // pred_check_branch
      %24 = sbr.rel (0) target = $region21
    $region20: #{_audio_only_impl.1} parent=1 // pred_region
      _
    $region21: #{_audio_only_impl.1} parent=1 // pred_fallthru
      _
    // Predicated region
    $region22: #{_audio_only_impl.1} parent=1 // pred_check
      _
    $region23: #{_audio_only_impl.1} parent=1 // pred_check_branch
      %26 = sbr.rel (0) target = $region25
    $region24: #{_audio_only_impl.1} parent=1 // pred_region
      _
    $region25: #{_audio_only_impl.1} parent=1 // pred_fallthru
      _
    // Predicated region
    $region26: #{_audio_only_impl.1} parent=1 // pred_check
      _
    $region27: #{_audio_only_impl.1} parent=1 // pred_check_branch
      %28 = sbr.rel (0) target = $region29
    $region28: #{_audio_only_impl.1} parent=1 // pred_region
      _
    $region29: #{_audio_only_impl.1} parent=1 // pred_fallthru
      _
    // Predicated region
    $region30: #{_audio_only_impl.1} parent=1 // pred_check
      _
    $region31: #{_audio_only_impl.1} parent=1 // pred_check_branch
      %30 = sbr.rel (0) target = $region33
    $region32: #{_audio_only_impl.1} parent=1 // pred_region
      _
    $region33: #{_audio_only_impl.1} parent=1 // pred_fallthru
      _
    // Predicated region
    $region34: #{_audio_only_impl.1} parent=1 // pred_check
      _
    $region35: #{_audio_only_impl.1} parent=1 // pred_check_branch
      %32 = sbr.rel (0) target = $region37
    $region36: #{_audio_only_impl.1} parent=1 // pred_region
      _
    $region37: #{_audio_only_impl.1} parent=1 // pred_fallthru
      _
    %p33 = scmp.eq.s32.totalorder 0, 0
    // Predicated region
    $region38: #{_audio_only_impl.1} parent=1 // pred_check
      %p34 = pneg %p33
    $region39: #{_audio_only_impl.1} parent=1 // pred_check_branch
      %36 = sbr.rel (%p34) target = $region41
    $region40: #{_audio_only_impl.1} parent=1 // pred_region
      %37 = vst [vmem:[#allocation2] sm:$0xff] 0.0
      %38 = vst [vmem:[#allocation2 + $0x8] sm:$0xff] 0.0
      %39 = vst [vmem:[#allocation2 + $0x10] sm:$0xff] 0.0
      %40 = vst [vmem:[#allocation2 + $0x18] sm:$0xff] 0.0
      %41 = vst [vmem:[#allocation2 + $0x20] sm:$0xff] 0.0
      %42 = vst [vmem:[#allocation2 + $0x28] sm:$0xff] 0.0
      %43 = vst [vmem:[#allocation2 + $0x30] sm:$0xff] 0.0
      %44 = vst [vmem:[#allocation2 + $0x38] sm:$0xff] 0.0
    $region41: #{_audio_only_impl.1} parent=1 // pred_fallthru
      _
    %v45 = vld [vmem:[#allocation2] sm:$0xff]
    %v46 = vld [vmem:[#allocation2 + $0x8] sm:$0xff]
    %v47 = vld [vmem:[#allocation2 + $0x10] sm:$0xff]
    %v48 = vld [vmem:[#allocation2 + $0x18] sm:$0xff]
    %v49 = vld [vmem:[#allocation2 + $0x20] sm:$0xff]
    %v50 = vld [vmem:[#allocation2 + $0x28] sm:$0xff]
    %v51 = vld [vmem:[#allocation2 + $0x30] sm:$0xff]
    %v52 = vld [vmem:[#allocation2 + $0x38] sm:$0xff]
    %v53 = vld [vmem:[%s0] sm:$0xff]
    %v54 = vld [vmem:[%s0 + $0x8] sm:$0xff]
    %v55 = vld [vmem:[%s0 + $0x10] sm:$0xff]
    %v56 = vld [vmem:[%s0 + $0x18] sm:$0xff]
    %v57 = vld [vmem:[%s0 + $0x20] sm:$0xff]
    %v58 = vld [vmem:[%s0 + $0x28] sm:$0xff]
    %v59 = vld [vmem:[%s0 + $0x30] sm:$0xff]
    %v60 = vld [vmem:[%s0 + $0x38] sm:$0xff]
    %v61 = vadd.f32 %v53, 0.0
    %v62 = vadd.f32 %v54, 0.0
    %v63 = vadd.f32 %v55, 0.0
    %v64 = vadd.f32 %v56, 0.0
    %v65 = vadd.f32 %v57, 0.0
    %v66 = vadd.f32 %v58, 0.0
    %v67 = vadd.f32 %v59, 0.0
    %v68 = vadd.f32 %v60, 0.0
    %v69 = vadd.f32 %v45, %v61
    %v70 = vadd.f32 %v46, %v62
    %v71 = vadd.f32 %v47, %v63
    %v72 = vadd.f32 %v48, %v64
    %v73 = vadd.f32 %v49, %v65
    %v74 = vadd.f32 %v50, %v66
    %v75 = vadd.f32 %v51, %v67
    %v76 = vadd.f32 %v52, %v68
    %77 = vst [vmem:[#allocation2] sm:$0xff] %v69
    %78 = vst [vmem:[#allocation2 + $0x8] sm:$0xff] %v70
    %79 = vst [vmem:[#allocation2 + $0x10] sm:$0xff] %v71
    %80 = vst [vmem:[#allocation2 + $0x18] sm:$0xff] %v72
    %81 = vst [vmem:[#allocation2 + $0x20] sm:$0xff] %v73
    %82 = vst [vmem:[#allocation2 + $0x28] sm:$0xff] %v74
    %83 = vst [vmem:[#allocation2 + $0x30] sm:$0xff] %v75
    %84 = vst [vmem:[#allocation2 + $0x38] sm:$0xff] %v76
    // Predicated region
    $region42: #{_audio_only_impl.1} parent=1 // pred_check
      %p85 = pneg %p33
    $region43: #{_audio_only_impl.1} parent=1 // pred_check_branch
      %87 = sbr.rel (%p85) target = $region45
    $region44: #{_audio_only_impl.1} parent=1 // pred_region
      %v88 = vld [vmem:[#allocation2] sm:$0xff]
      %v89 = vld [vmem:[#allocation2 + $0x8] sm:$0xff]
      %v90 = vld [vmem:[#allocation2 + $0x10] sm:$0xff]
      %v91 = vld [vmem:[#allocation2 + $0x18] sm:$0xff]
      %v92 = vld [vmem:[#allocation2 + $0x20] sm:$0xff]
      %v93 = vld [vmem:[#allocation2 + $0x28] sm:$0xff]
      %v94 = vld [vmem:[#allocation2 + $0x30] sm:$0xff]
      %v95 = vld [vmem:[#allocation2 + $0x38] sm:$0xff]
      %v96 = vrot.slane %v88, 4
      %v97 = vadd.f32 %v88, %v96
      %v98 = vrot.slane %v97, 2
      %v99 = vadd.f32 %v97, %v98
      %v100 = vrot.slane %v99, 1
      %v101 = vadd.f32 %v99, %v100
      %v102 = vrot.slane %v89, 4
      %v103 = vadd.f32 %v89, %v102
      %v104 = vrot.slane %v103, 2
      %v105 = vadd.f32 %v103, %v104
      %v106 = vrot.slane %v105, 1
      %v107 = vadd.f32 %v105, %v106
      %v108 = vrot.slane %v90, 4
      %v109 = vadd.f32 %v90, %v108
      %v110 = vrot.slane %v109, 2
      %v111 = vadd.f32 %v109, %v110
      %v112 = vrot.slane %v111, 1
      %v113 = vadd.f32 %v111, %v112
      %v114 = vrot.slane %v91, 4
      %v115 = vadd.f32 %v91, %v114
      %v116 = vrot.slane %v115, 2
      %v117 = vadd.f32 %v115, %v116
      %v118 = vrot.slane %v117, 1
      %v119 = vadd.f32 %v117, %v118
      %v120 = vrot.slane %v92, 4
      %v121 = vadd.f32 %v92, %v120
      %v122 = vrot.slane %v121, 2
      %v123 = vadd.f32 %v121, %v122
      %v124 = vrot.slane %v123, 1
      %v125 = vadd.f32 %v123, %v124
      %v126 = vrot.slane %v93, 4
      %v127 = vadd.f32 %v93, %v126
      %v128 = vrot.slane %v127, 2
      %v129 = vadd.f32 %v127, %v128
      %v130 = vrot.slane %v129, 1
      %v131 = vadd.f32 %v129, %v130
      %v132 = vrot.slane %v94, 4
      %v133 = vadd.f32 %v94, %v132
      %v134 = vrot.slane %v133, 2
      %v135 = vadd.f32 %v133, %v134
      %v136 = vrot.slane %v135, 1
      %v137 = vadd.f32 %v135, %v136
      %v138 = vrot.slane %v95, 4
      %v139 = vadd.f32 %v95, %v138
      %v140 = vrot.slane %v139, 2
      %v141 = vadd.f32 %v139, %v140
      %v142 = vrot.slane %v141, 1
      %v143 = vadd.f32 %v141, %v142
      %v144 = vpack.c.bf16 %v101, %v101
      %v145 = vpack.c.bf16 %v107, %v107
      %v146 = vpack.c.bf16 %v113, %v113
      %v147 = vpack.c.bf16 %v119, %v119
      %v148 = vpack.c.bf16 %v125, %v125
      %v149 = vpack.c.bf16 %v131, %v131
      %v150 = vpack.c.bf16 %v137, %v137
      %v151 = vpack.c.bf16 %v143, %v143
      %v152 = vld [vmem:[%s1] sm:$0xff]
      %v153 = vld [vmem:[%s1 + $0x8] sm:$0xff]
      %v154 = vld [vmem:[%s1 + $0x10] sm:$0xff]
      %v155 = vld [vmem:[%s1 + $0x18] sm:$0xff]
      %v156 = vld [vmem:[%s1 + $0x20] sm:$0xff]
      %v157 = vld [vmem:[%s1 + $0x28] sm:$0xff]
      %v158 = vld [vmem:[%s1 + $0x30] sm:$0xff]
      %v159 = vld [vmem:[%s1 + $0x38] sm:$0xff]
      %v160 = vld [vmem:[%s1 + $0x40] sm:$0xff]
      %v161 = vld [vmem:[%s1 + $0x48] sm:$0xff]
      %v162 = vld [vmem:[%s1 + $0x50] sm:$0xff]
      %v163 = vld [vmem:[%s1 + $0x58] sm:$0xff]
      %v164 = vld [vmem:[%s1 + $0x60] sm:$0xff]
      %v165 = vld [vmem:[%s1 + $0x68] sm:$0xff]
      %v166 = vld [vmem:[%s1 + $0x70] sm:$0xff]
      %v167 = vld [vmem:[%s1 + $0x78] sm:$0xff]
      %v168 = vld [vmem:[%s1 + $0x80] sm:$0xff]
      %v169 = vld [vmem:[%s1 + $0x88] sm:$0xff]
      %v170 = vld [vmem:[%s1 + $0x90] sm:$0xff]
      %v171 = vld [vmem:[%s1 + $0x98] sm:$0xff]
      %v172 = vld [vmem:[%s1 + $0xa0] sm:$0xff]
      %v173 = vld [vmem:[%s1 + $0xa8] sm:$0xff]
      %v174 = vld [vmem:[%s1 + $0xb0] sm:$0xff]
      %v175 = vld [vmem:[%s1 + $0xb8] sm:$0xff]
      %v176 = vld [vmem:[%s1 + $0xc0] sm:$0xff]
      %v177 = vld [vmem:[%s1 + $0xc8] sm:$0xff]
      %v178 = vld [vmem:[%s1 + $0xd0] sm:$0xff]
      %v179 = vld [vmem:[%s1 + $0xd8] sm:$0xff]
      %v180 = vld [vmem:[%s1 + $0xe0] sm:$0xff]
      %v181 = vld [vmem:[%s1 + $0xe8] sm:$0xff]
      %v182 = vld [vmem:[%s1 + $0xf0] sm:$0xff]
      %v183 = vld [vmem:[%s1 + $0xf8] sm:$0xff]
      %v184 = vld [vmem:[%s2] sm:$0xf]
      %v186 = vperm.slane %v184, 0
      %v187 = vperm.slane %v184, 1
      %v188 = vperm.slane %v184, 2
      %v189 = vperm.slane %v184, 3
      %v202 = vunpack.c.l.b16 %v144
      %v203 = vunpack.c.l.b16 %v145
      %v204 = vunpack.c.l.b16 %v146
      %v205 = vunpack.c.l.b16 %v147
      %v206 = vunpack.c.l.b16 %v148
      %v207 = vunpack.c.l.b16 %v149
      %v208 = vunpack.c.l.b16 %v150
      %v209 = vunpack.c.l.b16 %v151
      %vm210 = vcmask 1041409
      %v211 = vsel %vm210, %v203, %v202
      %vm212 = vcmask 1042434
      %v213 = vsel %vm212, %v204, %v211
      %vm214 = vcmask 1043459
      %v215 = vsel %vm214, %v205, %v213
      %vm216 = vcmask 1044484
      %v217 = vsel %vm216, %v206, %v215
      %vm218 = vcmask 1045509
      %v219 = vsel %vm218, %v207, %v217
      %vm220 = vcmask 1046534
      %v221 = vsel %vm220, %v208, %v219
      %vm222 = vcmask 1047559
      %v223 = vsel %vm222, %v209, %v221
      %v224 = vpack.c.b16 %v223, %v223
      %v258 = vunpack.c.l.b16 %v152
      %v259 = vunpack.c.h.b16 %v152
      %v260 = vunpack.c.l.b16 %v153
      %v261 = vunpack.c.h.b16 %v153
      %v262 = vunpack.c.l.b16 %v154
      %v263 = vunpack.c.h.b16 %v154
      %v264 = vunpack.c.l.b16 %v155
      %v265 = vunpack.c.h.b16 %v155
      %v266 = vunpack.c.l.b16 %v156
      %v267 = vunpack.c.h.b16 %v156
      %v268 = vunpack.c.l.b16 %v157
      %v269 = vunpack.c.h.b16 %v157
      %v270 = vunpack.c.l.b16 %v158
      %v271 = vunpack.c.h.b16 %v158
      %v272 = vunpack.c.l.b16 %v159
      %v273 = vunpack.c.h.b16 %v159
      %v274 = vunpack.c.l.b16 %v160
      %v275 = vunpack.c.h.b16 %v160
      %v276 = vunpack.c.l.b16 %v161
      %v277 = vunpack.c.h.b16 %v161
      %v278 = vunpack.c.l.b16 %v162
      %v279 = vunpack.c.h.b16 %v162
      %v280 = vunpack.c.l.b16 %v163
      %v281 = vunpack.c.h.b16 %v163
      %v282 = vunpack.c.l.b16 %v164
      %v283 = vunpack.c.h.b16 %v164
      %v284 = vunpack.c.l.b16 %v165
      %v285 = vunpack.c.h.b16 %v165
      %v286 = vunpack.c.l.b16 %v166
      %v287 = vunpack.c.h.b16 %v166
      %v288 = vunpack.c.l.b16 %v167
      %v289 = vunpack.c.h.b16 %v167
      %v290 = vunpack.c.l.b16 %v168
      %v291 = vunpack.c.h.b16 %v168
      %v292 = vunpack.c.l.b16 %v169
      %v293 = vunpack.c.h.b16 %v169
      %v294 = vunpack.c.l.b16 %v170
      %v295 = vunpack.c.h.b16 %v170
      %v296 = vunpack.c.l.b16 %v171
      %v297 = vunpack.c.h.b16 %v171
      %v298 = vunpack.c.l.b16 %v172
      %v299 = vunpack.c.h.b16 %v172
      %v300 = vunpack.c.l.b16 %v173
      %v301 = vunpack.c.h.b16 %v173
      %v302 = vunpack.c.l.b16 %v174
      %v303 = vunpack.c.h.b16 %v174
      %v304 = vunpack.c.l.b16 %v175
      %v305 = vunpack.c.h.b16 %v175
      %v306 = vunpack.c.l.b16 %v176
      %v307 = vunpack.c.h.b16 %v176
      %v308 = vunpack.c.l.b16 %v177
      %v309 = vunpack.c.h.b16 %v177
      %v310 = vunpack.c.l.b16 %v178
      %v311 = vunpack.c.h.b16 %v178
      %v312 = vunpack.c.l.b16 %v179
      %v313 = vunpack.c.h.b16 %v179
      %v314 = vunpack.c.l.b16 %v180
      %v315 = vunpack.c.h.b16 %v180
      %v316 = vunpack.c.l.b16 %v181
      %v317 = vunpack.c.h.b16 %v181
      %v318 = vunpack.c.l.b16 %v182
      %v319 = vunpack.c.h.b16 %v182
      %v320 = vunpack.c.l.b16 %v183
      %v321 = vunpack.c.h.b16 %v183
      %v322 = vpack.c.b16 %v262, %v258
      %v323 = vpack.c.b16 %v263, %v259
      %v324 = vpack.c.b16 %v264, %v260
      %v325 = vpack.c.b16 %v265, %v261
      %v326 = vpack.c.b16 %v270, %v266
      %v327 = vpack.c.b16 %v271, %v267
      %v328 = vpack.c.b16 %v272, %v268
      %v329 = vpack.c.b16 %v273, %v269
      %v330 = vpack.c.b16 %v278, %v274
      %v331 = vpack.c.b16 %v279, %v275
      %v332 = vpack.c.b16 %v280, %v276
      %v333 = vpack.c.b16 %v281, %v277
      %v334 = vpack.c.b16 %v286, %v282
      %v335 = vpack.c.b16 %v287, %v283
      %v336 = vpack.c.b16 %v288, %v284
      %v337 = vpack.c.b16 %v289, %v285
      %v338 = vpack.c.b16 %v294, %v290
      %v339 = vpack.c.b16 %v295, %v291
      %v340 = vpack.c.b16 %v296, %v292
      %v341 = vpack.c.b16 %v297, %v293
      %v342 = vpack.c.b16 %v302, %v298
      %v343 = vpack.c.b16 %v303, %v299
      %v344 = vpack.c.b16 %v304, %v300
      %v345 = vpack.c.b16 %v305, %v301
      %v346 = vpack.c.b16 %v310, %v306
      %v347 = vpack.c.b16 %v311, %v307
      %v348 = vpack.c.b16 %v312, %v308
      %v349 = vpack.c.b16 %v313, %v309
      %v350 = vpack.c.b16 %v318, %v314
      %v351 = vpack.c.b16 %v319, %v315
      %v352 = vpack.c.b16 %v320, %v316
      %v353 = vpack.c.b16 %v321, %v317
      %386 = vmatpush.bf16.msra.mxu0 %v350
      %387 = vmatpush.bf16.msra.mxu0 %v346
      %388 = vmatpush.bf16.msra.mxu0 %v342
      %389 = vmatpush.bf16.msra.mxu0 %v338
      %390 = vmatpush.bf16.msra.mxu0 %v334
      %391 = vmatpush.bf16.msra.mxu0 %v330
      %392 = vmatpush.bf16.msra.mxu0 %v326
      %393 = vmatpush.bf16.msra.mxu0 %v322
      %394 = vmatmul.bf16.gmra.mxu0 %v224
      %v395 = vpop.f32.mrf.mxu0
      %v396 = vadd.f32 %v186, %v395
      %v397 = vpop.f32.mrf.mxu0
      %398 = vdwg.mxu0
      %399 = vmatpush.bf16.msra.mxu0 %v351
      %400 = vmatpush.bf16.msra.mxu0 %v347
      %401 = vmatpush.bf16.msra.mxu0 %v343
      %402 = vmatpush.bf16.msra.mxu0 %v339
      %403 = vmatpush.bf16.msra.mxu0 %v335
      %404 = vmatpush.bf16.msra.mxu0 %v331
      %405 = vmatpush.bf16.msra.mxu0 %v327
      %406 = vmatpush.bf16.msra.mxu0 %v323
      %407 = vmatmul.bf16.gmra.mxu0 %v224
      %v408 = vpop.f32.mrf.mxu0
      %v409 = vadd.f32 %v187, %v408
      %v410 = vpop.f32.mrf.mxu0
      %411 = vdwg.mxu0
      %412 = vmatpush.bf16.msra.mxu0 %v352
      %413 = vmatpush.bf16.msra.mxu0 %v348
      %414 = vmatpush.bf16.msra.mxu0 %v344
      %415 = vmatpush.bf16.msra.mxu0 %v340
      %416 = vmatpush.bf16.msra.mxu0 %v336
      %417 = vmatpush.bf16.msra.mxu0 %v332
      %418 = vmatpush.bf16.msra.mxu0 %v328
      %419 = vmatpush.bf16.msra.mxu0 %v324
      %420 = vmatmul.bf16.gmra.mxu0 %v224
      %v421 = vpop.f32.mrf.mxu0
      %v422 = vadd.f32 %v188, %v421
      %v423 = vpop.f32.mrf.mxu0
      %424 = vdwg.mxu0
      %425 = vmatpush.bf16.msra.mxu0 %v353
      %426 = vmatpush.bf16.msra.mxu0 %v349
      %427 = vmatpush.bf16.msra.mxu0 %v345
      %428 = vmatpush.bf16.msra.mxu0 %v341
      %429 = vmatpush.bf16.msra.mxu0 %v337
      %430 = vmatpush.bf16.msra.mxu0 %v333
      %431 = vmatpush.bf16.msra.mxu0 %v329
      %432 = vmatpush.bf16.msra.mxu0 %v325
      %433 = vmatmul.bf16.gmra.mxu0 %v224
      %v434 = vpop.f32.mrf.mxu0
      %v435 = vadd.f32 %v189, %v434
      %v436 = vpop.f32.mrf.mxu0
      %437 = vdwg.mxu0
      %v438 = vmax.f32 %v396, 0.0
      %v439 = vmax.f32 %v409, 0.0
      %v440 = vmax.f32 %v422, 0.0
      %v441 = vmax.f32 %v435, 0.0
      %v442 = vpack.c.bf16 %v438, %v438
      %v443 = vpack.c.bf16 %v439, %v439
      %v444 = vpack.c.bf16 %v440, %v440
      %v445 = vpack.c.bf16 %v441, %v441
      %v446 = vld [vmem:[%s3] sm:$0xff]
      %v447 = vld [vmem:[%s3 + $0x8] sm:$0xff]
      %v448 = vld [vmem:[%s3 + $0x10] sm:$0xff]
      %v449 = vld [vmem:[%s3 + $0x18] sm:$0xff]
      %v450 = vld [vmem:[%s3 + $0x20] sm:$0xff]
      %v451 = vld [vmem:[%s3 + $0x28] sm:$0xff]
      %v452 = vld [vmem:[%s3 + $0x30] sm:$0xff]
      %v453 = vld [vmem:[%s3 + $0x38] sm:$0xff]
      %v454 = vld [vmem:[%s3 + $0x40] sm:$0xff]
      %v455 = vld [vmem:[%s3 + $0x48] sm:$0xff]
      %v456 = vld [vmem:[%s3 + $0x50] sm:$0xff]
      %v457 = vld [vmem:[%s3 + $0x58] sm:$0xff]
      %v458 = vld [vmem:[%s3 + $0x60] sm:$0xff]
      %v459 = vld [vmem:[%s3 + $0x68] sm:$0xff]
      %v460 = vld [vmem:[%s3 + $0x70] sm:$0xff]
      %v461 = vld [vmem:[%s3 + $0x78] sm:$0xff]
      %v462 = vld [vmem:[%s3 + $0x80] sm:$0xff]
      %v463 = vld [vmem:[%s3 + $0x88] sm:$0xff]
      %v464 = vld [vmem:[%s3 + $0x90] sm:$0xff]
      %v465 = vld [vmem:[%s3 + $0x98] sm:$0xff]
      %v466 = vld [vmem:[%s3 + $0xa0] sm:$0xff]
      %v467 = vld [vmem:[%s3 + $0xa8] sm:$0xff]
      %v468 = vld [vmem:[%s3 + $0xb0] sm:$0xff]
      %v469 = vld [vmem:[%s3 + $0xb8] sm:$0xff]
      %v470 = vld [vmem:[%s3 + $0xc0] sm:$0xff]
      %v471 = vld [vmem:[%s3 + $0xc8] sm:$0xff]
      %v472 = vld [vmem:[%s3 + $0xd0] sm:$0xff]
      %v473 = vld [vmem:[%s3 + $0xd8] sm:$0xff]
      %v474 = vld [vmem:[%s3 + $0xe0] sm:$0xff]
      %v475 = vld [vmem:[%s3 + $0xe8] sm:$0xff]
      %v476 = vld [vmem:[%s3 + $0xf0] sm:$0xff]
      %v477 = vld [vmem:[%s3 + $0xf8] sm:$0xff]
      %v478 = vld [vmem:[%s3 + $0x100] sm:$0xff]
      %v479 = vld [vmem:[%s3 + $0x108] sm:$0xff]
      %v480 = vld [vmem:[%s3 + $0x110] sm:$0xff]
      %v481 = vld [vmem:[%s3 + $0x118] sm:$0xff]
      %v482 = vld [vmem:[%s3 + $0x120] sm:$0xff]
      %v483 = vld [vmem:[%s3 + $0x128] sm:$0xff]
      %v484 = vld [vmem:[%s3 + $0x130] sm:$0xff]
      %v485 = vld [vmem:[%s3 + $0x138] sm:$0xff]
      %v486 = vld [vmem:[%s3 + $0x140] sm:$0xff]
      %v487 = vld [vmem:[%s3 + $0x148] sm:$0xff]
      %v488 = vld [vmem:[%s3 + $0x150] sm:$0xff]
      %v489 = vld [vmem:[%s3 + $0x158] sm:$0xff]
      %v490 = vld [vmem:[%s3 + $0x160] sm:$0xff]
      %v491 = vld [vmem:[%s3 + $0x168] sm:$0xff]
      %v492 = vld [vmem:[%s3 + $0x170] sm:$0xff]
      %v493 = vld [vmem:[%s3 + $0x178] sm:$0xff]
      %v494 = vld [vmem:[%s3 + $0x180] sm:$0xff]
      %v495 = vld [vmem:[%s3 + $0x188] sm:$0xff]
      %v496 = vld [vmem:[%s3 + $0x190] sm:$0xff]
      %v497 = vld [vmem:[%s3 + $0x198] sm:$0xff]
      %v498 = vld [vmem:[%s3 + $0x1a0] sm:$0xff]
      %v499 = vld [vmem:[%s3 + $0x1a8] sm:$0xff]
      %v500 = vld [vmem:[%s3 + $0x1b0] sm:$0xff]
      %v501 = vld [vmem:[%s3 + $0x1b8] sm:$0xff]
      %v502 = vld [vmem:[%s3 + $0x1c0] sm:$0xff]
      %v503 = vld [vmem:[%s3 + $0x1c8] sm:$0xff]
      %v504 = vld [vmem:[%s3 + $0x1d0] sm:$0xff]
      %v505 = vld [vmem:[%s3 + $0x1d8] sm:$0xff]
      %v506 = vld [vmem:[%s3 + $0x1e0] sm:$0xff]
      %v507 = vld [vmem:[%s3 + $0x1e8] sm:$0xff]
      %v508 = vld [vmem:[%s3 + $0x1f0] sm:$0xff]
      %v509 = vld [vmem:[%s3 + $0x1f8] sm:$0xff]
      %v510 = vld [vmem:[%s4] sm:$0x3]
      %v512 = vperm.slane %v510, 0
      %v513 = vperm.slane %v510, 1
      %v580 = vunpack.c.l.b16 %v446
      %v581 = vunpack.c.h.b16 %v446
      %v582 = vunpack.c.l.b16 %v447
      %v583 = vunpack.c.h.b16 %v447
      %v584 = vunpack.c.l.b16 %v448
      %v585 = vunpack.c.h.b16 %v448
      %v586 = vunpack.c.l.b16 %v449
      %v587 = vunpack.c.h.b16 %v449
      %v588 = vunpack.c.l.b16 %v450
      %v589 = vunpack.c.h.b16 %v450
      %v590 = vunpack.c.l.b16 %v451
      %v591 = vunpack.c.h.b16 %v451
      %v592 = vunpack.c.l.b16 %v452
      %v593 = vunpack.c.h.b16 %v452
      %v594 = vunpack.c.l.b16 %v453
      %v595 = vunpack.c.h.b16 %v453
      %v596 = vunpack.c.l.b16 %v454
      %v597 = vunpack.c.h.b16 %v454
      %v598 = vunpack.c.l.b16 %v455
      %v599 = vunpack.c.h.b16 %v455
      %v600 = vunpack.c.l.b16 %v456
      %v601 = vunpack.c.h.b16 %v456
      %v602 = vunpack.c.l.b16 %v457
      %v603 = vunpack.c.h.b16 %v457
      %v604 = vunpack.c.l.b16 %v458
      %v605 = vunpack.c.h.b16 %v458
      %v606 = vunpack.c.l.b16 %v459
      %v607 = vunpack.c.h.b16 %v459
      %v608 = vunpack.c.l.b16 %v460
      %v609 = vunpack.c.h.b16 %v460
      %v610 = vunpack.c.l.b16 %v461
      %v611 = vunpack.c.h.b16 %v461
      %v612 = vunpack.c.l.b16 %v462
      %v613 = vunpack.c.h.b16 %v462
      %v614 = vunpack.c.l.b16 %v463
      %v615 = vunpack.c.h.b16 %v463
      %v616 = vunpack.c.l.b16 %v464
      %v617 = vunpack.c.h.b16 %v464
      %v618 = vunpack.c.l.b16 %v465
      %v619 = vunpack.c.h.b16 %v465
      %v620 = vunpack.c.l.b16 %v466
      %v621 = vunpack.c.h.b16 %v466
      %v622 = vunpack.c.l.b16 %v467
      %v623 = vunpack.c.h.b16 %v467
      %v624 = vunpack.c.l.b16 %v468
      %v625 = vunpack.c.h.b16 %v468
      %v626 = vunpack.c.l.b16 %v469
      %v627 = vunpack.c.h.b16 %v469
      %v628 = vunpack.c.l.b16 %v470
      %v629 = vunpack.c.h.b16 %v470
      %v630 = vunpack.c.l.b16 %v471
      %v631 = vunpack.c.h.b16 %v471
      %v632 = vunpack.c.l.b16 %v472
      %v633 = vunpack.c.h.b16 %v472
      %v634 = vunpack.c.l.b16 %v473
      %v635 = vunpack.c.h.b16 %v473
      %v636 = vunpack.c.l.b16 %v474
      %v637 = vunpack.c.h.b16 %v474
      %v638 = vunpack.c.l.b16 %v475
      %v639 = vunpack.c.h.b16 %v475
      %v640 = vunpack.c.l.b16 %v476
      %v641 = vunpack.c.h.b16 %v476
      %v642 = vunpack.c.l.b16 %v477
      %v643 = vunpack.c.h.b16 %v477
      %v644 = vunpack.c.l.b16 %v478
      %v645 = vunpack.c.h.b16 %v478
      %v646 = vunpack.c.l.b16 %v479
      %v647 = vunpack.c.h.b16 %v479
      %v648 = vunpack.c.l.b16 %v480
      %v649 = vunpack.c.h.b16 %v480
      %v650 = vunpack.c.l.b16 %v481
      %v651 = vunpack.c.h.b16 %v481
      %v652 = vunpack.c.l.b16 %v482
      %v653 = vunpack.c.h.b16 %v482
      %v654 = vunpack.c.l.b16 %v483
      %v655 = vunpack.c.h.b16 %v483
      %v656 = vunpack.c.l.b16 %v484
      %v657 = vunpack.c.h.b16 %v484
      %v658 = vunpack.c.l.b16 %v485
      %v659 = vunpack.c.h.b16 %v485
      %v660 = vunpack.c.l.b16 %v486
      %v661 = vunpack.c.h.b16 %v486
      %v662 = vunpack.c.l.b16 %v487
      %v663 = vunpack.c.h.b16 %v487
      %v664 = vunpack.c.l.b16 %v488
      %v665 = vunpack.c.h.b16 %v488
      %v666 = vunpack.c.l.b16 %v489
      %v667 = vunpack.c.h.b16 %v489
      %v668 = vunpack.c.l.b16 %v490
      %v669 = vunpack.c.h.b16 %v490
      %v670 = vunpack.c.l.b16 %v491
      %v671 = vunpack.c.h.b16 %v491
      %v672 = vunpack.c.l.b16 %v492
      %v673 = vunpack.c.h.b16 %v492
      %v674 = vunpack.c.l.b16 %v493
      %v675 = vunpack.c.h.b16 %v493
      %v676 = vunpack.c.l.b16 %v494
      %v677 = vunpack.c.h.b16 %v494
      %v678 = vunpack.c.l.b16 %v495
      %v679 = vunpack.c.h.b16 %v495
      %v680 = vunpack.c.l.b16 %v496
      %v681 = vunpack.c.h.b16 %v496
      %v682 = vunpack.c.l.b16 %v497
      %v683 = vunpack.c.h.b16 %v497
      %v684 = vunpack.c.l.b16 %v498
      %v685 = vunpack.c.h.b16 %v498
      %v686 = vunpack.c.l.b16 %v499
      %v687 = vunpack.c.h.b16 %v499
      %v688 = vunpack.c.l.b16 %v500
      %v689 = vunpack.c.h.b16 %v500
      %v690 = vunpack.c.l.b16 %v501
      %v691 = vunpack.c.h.b16 %v501
      %v692 = vunpack.c.l.b16 %v502
      %v693 = vunpack.c.h.b16 %v502
      %v694 = vunpack.c.l.b16 %v503
      %v695 = vunpack.c.h.b16 %v503
      %v696 = vunpack.c.l.b16 %v504
      %v697 = vunpack.c.h.b16 %v504
      %v698 = vunpack.c.l.b16 %v505
      %v699 = vunpack.c.h.b16 %v505
      %v700 = vunpack.c.l.b16 %v506
      %v701 = vunpack.c.h.b16 %v506
      %v702 = vunpack.c.l.b16 %v507
      %v703 = vunpack.c.h.b16 %v507
      %v704 = vunpack.c.l.b16 %v508
      %v705 = vunpack.c.h.b16 %v508
      %v706 = vunpack.c.l.b16 %v509
      %v707 = vunpack.c.h.b16 %v509
      %v708 = vpack.c.b16 %v582, %v580
      %v709 = vpack.c.b16 %v583, %v581
      %v710 = vpack.c.b16 %v586, %v584
      %v711 = vpack.c.b16 %v587, %v585
      %v712 = vpack.c.b16 %v590, %v588
      %v713 = vpack.c.b16 %v591, %v589
      %v714 = vpack.c.b16 %v594, %v592
      %v715 = vpack.c.b16 %v595, %v593
      %v716 = vpack.c.b16 %v598, %v596
      %v717 = vpack.c.b16 %v599, %v597
      %v718 = vpack.c.b16 %v602, %v600
      %v719 = vpack.c.b16 %v603, %v601
      %v720 = vpack.c.b16 %v606, %v604
      %v721 = vpack.c.b16 %v607, %v605
      %v722 = vpack.c.b16 %v610, %v608
      %v723 = vpack.c.b16 %v611, %v609
      %v724 = vpack.c.b16 %v614, %v612
      %v725 = vpack.c.b16 %v615, %v613
      %v726 = vpack.c.b16 %v618, %v616
      %v727 = vpack.c.b16 %v619, %v617
      %v728 = vpack.c.b16 %v622, %v620
      %v729 = vpack.c.b16 %v623, %v621
      %v730 = vpack.c.b16 %v626, %v624
      %v731 = vpack.c.b16 %v627, %v625
      %v732 = vpack.c.b16 %v630, %v628
      %v733 = vpack.c.b16 %v631, %v629
      %v734 = vpack.c.b16 %v634, %v632
      %v735 = vpack.c.b16 %v635, %v633
      %v736 = vpack.c.b16 %v638, %v636
      %v737 = vpack.c.b16 %v639, %v637
      %v738 = vpack.c.b16 %v642, %v640
      %v739 = vpack.c.b16 %v643, %v641
      %v740 = vpack.c.b16 %v646, %v644
      %v741 = vpack.c.b16 %v647, %v645
      %v742 = vpack.c.b16 %v650, %v648
      %v743 = vpack.c.b16 %v651, %v649
      %v744 = vpack.c.b16 %v654, %v652
      %v745 = vpack.c.b16 %v655, %v653
      %v746 = vpack.c.b16 %v658, %v656
      %v747 = vpack.c.b16 %v659, %v657
      %v748 = vpack.c.b16 %v662, %v660
      %v749 = vpack.c.b16 %v663, %v661
      %v750 = vpack.c.b16 %v666, %v664
      %v751 = vpack.c.b16 %v667, %v665
      %v752 = vpack.c.b16 %v670, %v668
      %v753 = vpack.c.b16 %v671, %v669
      %v754 = vpack.c.b16 %v674, %v672
      %v755 = vpack.c.b16 %v675, %v673
      %v756 = vpack.c.b16 %v678, %v676
      %v757 = vpack.c.b16 %v679, %v677
      %v758 = vpack.c.b16 %v682, %v680
      %v759 = vpack.c.b16 %v683, %v681
      %v760 = vpack.c.b16 %v686, %v684
      %v761 = vpack.c.b16 %v687, %v685
      %v762 = vpack.c.b16 %v690, %v688
      %v763 = vpack.c.b16 %v691, %v689
      %v764 = vpack.c.b16 %v694, %v692
      %v765 = vpack.c.b16 %v695, %v693
      %v766 = vpack.c.b16 %v698, %v696
      %v767 = vpack.c.b16 %v699, %v697
      %v768 = vpack.c.b16 %v702, %v700
      %v769 = vpack.c.b16 %v703, %v701
      %v770 = vpack.c.b16 %v706, %v704
      %v771 = vpack.c.b16 %v707, %v705
      %836 = vmatpush.bf16.msra.mxu0 %v722
      %837 = vmatpush.bf16.msra.mxu0 %v720
      %838 = vmatpush.bf16.msra.mxu0 %v718
      %839 = vmatpush.bf16.msra.mxu0 %v716
      %840 = vmatpush.bf16.msra.mxu0 %v714
      %841 = vmatpush.bf16.msra.mxu0 %v712
      %842 = vmatpush.bf16.msra.mxu0 %v710
      %843 = vmatpush.bf16.msra.mxu0 %v708
      %844 = vmatmul.bf16.gmra.mxu0 %v442
      %v845 = vpop.f32.mrf.mxu0
      %v846 = vadd.f32 %v512, %v845
      %v847 = vpop.f32.mrf.mxu0
      %848 = vdwg.mxu0
      %849 = vmatpush.bf16.msra.mxu0 %v738
      %850 = vmatpush.bf16.msra.mxu0 %v736
      %851 = vmatpush.bf16.msra.mxu0 %v734
      %852 = vmatpush.bf16.msra.mxu0 %v732
      %853 = vmatpush.bf16.msra.mxu0 %v730
      %854 = vmatpush.bf16.msra.mxu0 %v728
      %855 = vmatpush.bf16.msra.mxu0 %v726
      %856 = vmatpush.bf16.msra.mxu0 %v724
      %857 = vmatmul.bf16.gmra.mxu0 %v443
      %v858 = vpop.f32.mrf.mxu0
      %v859 = vadd.f32 %v846, %v858
      %v860 = vpop.f32.mrf.mxu0
      %861 = vdwg.mxu0
      %862 = vmatpush.bf16.msra.mxu0 %v754
      %863 = vmatpush.bf16.msra.mxu0 %v752
      %864 = vmatpush.bf16.msra.mxu0 %v750
      %865 = vmatpush.bf16.msra.mxu0 %v748
      %866 = vmatpush.bf16.msra.mxu0 %v746
      %867 = vmatpush.bf16.msra.mxu0 %v744
      %868 = vmatpush.bf16.msra.mxu0 %v742
      %869 = vmatpush.bf16.msra.mxu0 %v740
      %870 = vmatmul.bf16.gmra.mxu0 %v444
      %v871 = vpop.f32.mrf.mxu0
      %v872 = vadd.f32 %v859, %v871
      %v873 = vpop.f32.mrf.mxu0
      %874 = vdwg.mxu0
      %875 = vmatpush.bf16.msra.mxu0 %v770
      %876 = vmatpush.bf16.msra.mxu0 %v768
      %877 = vmatpush.bf16.msra.mxu0 %v766
      %878 = vmatpush.bf16.msra.mxu0 %v764
      %879 = vmatpush.bf16.msra.mxu0 %v762
      %880 = vmatpush.bf16.msra.mxu0 %v760
      %881 = vmatpush.bf16.msra.mxu0 %v758
      %882 = vmatpush.bf16.msra.mxu0 %v756
      %883 = vmatmul.bf16.gmra.mxu0 %v445
      %v884 = vpop.f32.mrf.mxu0
      %v885 = vadd.f32 %v872, %v884
      %v886 = vpop.f32.mrf.mxu0
      %887 = vdwg.mxu0
      %888 = vmatpush.bf16.msra.mxu0 %v723
      %889 = vmatpush.bf16.msra.mxu0 %v721
      %890 = vmatpush.bf16.msra.mxu0 %v719
      %891 = vmatpush.bf16.msra.mxu0 %v717
      %892 = vmatpush.bf16.msra.mxu0 %v715
      %893 = vmatpush.bf16.msra.mxu0 %v713
      %894 = vmatpush.bf16.msra.mxu0 %v711
      %895 = vmatpush.bf16.msra.mxu0 %v709
      %896 = vmatmul.bf16.gmra.mxu0 %v442
      %v897 = vpop.f32.mrf.mxu0
      %v898 = vadd.f32 %v513, %v897
      %v899 = vpop.f32.mrf.mxu0
      %900 = vdwg.mxu0
      %901 = vmatpush.bf16.msra.mxu0 %v739
      %902 = vmatpush.bf16.msra.mxu0 %v737
      %903 = vmatpush.bf16.msra.mxu0 %v735
      %904 = vmatpush.bf16.msra.mxu0 %v733
      %905 = vmatpush.bf16.msra.mxu0 %v731
      %906 = vmatpush.bf16.msra.mxu0 %v729
      %907 = vmatpush.bf16.msra.mxu0 %v727
      %908 = vmatpush.bf16.msra.mxu0 %v725
      %909 = vmatmul.bf16.gmra.mxu0 %v443
      %v910 = vpop.f32.mrf.mxu0
      %v911 = vadd.f32 %v898, %v910
      %v912 = vpop.f32.mrf.mxu0
      %913 = vdwg.mxu0
      %914 = vmatpush.bf16.msra.mxu0 %v755
      %915 = vmatpush.bf16.msra.mxu0 %v753
      %916 = vmatpush.bf16.msra.mxu0 %v751
      %917 = vmatpush.bf16.msra.mxu0 %v749
      %918 = vmatpush.bf16.msra.mxu0 %v747
      %919 = vmatpush.bf16.msra.mxu0 %v745
      %920 = vmatpush.bf16.msra.mxu0 %v743
      %921 = vmatpush.bf16.msra.mxu0 %v741
      %922 = vmatmul.bf16.gmra.mxu0 %v444
      %v923 = vpop.f32.mrf.mxu0
      %v924 = vadd.f32 %v911, %v923
      %v925 = vpop.f32.mrf.mxu0
      %926 = vdwg.mxu0
      %927 = vmatpush.bf16.msra.mxu0 %v771
      %928 = vmatpush.bf16.msra.mxu0 %v769
      %929 = vmatpush.bf16.msra.mxu0 %v767
      %930 = vmatpush.bf16.msra.mxu0 %v765
      %931 = vmatpush.bf16.msra.mxu0 %v763
      %932 = vmatpush.bf16.msra.mxu0 %v761
      %933 = vmatpush.bf16.msra.mxu0 %v759
      %934 = vmatpush.bf16.msra.mxu0 %v757
      %935 = vmatmul.bf16.gmra.mxu0 %v445
      %v936 = vpop.f32.mrf.mxu0
      %v937 = vadd.f32 %v924, %v936
      %v938 = vpop.f32.mrf.mxu0
      %939 = vdwg.mxu0
      %v940 = vpack.c.bf16 %v885, %v885
      %v941 = vpack.c.bf16 %v937, %v937
      %v942 = vld [vmem:[%s5] sm:$0xf]
      %v943 = vld [vmem:[%s5 + $0x4] sm:$0xf]
      %v944 = vld [vmem:[%s5 + $0x8] sm:$0xf]
      %v945 = vld [vmem:[%s5 + $0xc] sm:$0xf]
      %v946 = vld [vmem:[%s5 + $0x10] sm:$0xf]
      %v947 = vld [vmem:[%s5 + $0x14] sm:$0xf]
      %v948 = vld [vmem:[%s5 + $0x18] sm:$0xf]
      %v949 = vld [vmem:[%s5 + $0x1c] sm:$0xf]
      %v950 = vld [vmem:[%s5 + $0x20] sm:$0xf]
      %v951 = vld [vmem:[%s5 + $0x24] sm:$0xf]
      %v952 = vld [vmem:[%s5 + $0x28] sm:$0xf]
      %v953 = vld [vmem:[%s5 + $0x2c] sm:$0xf]
      %v954 = vld [vmem:[%s5 + $0x30] sm:$0xf]
      %v955 = vld [vmem:[%s5 + $0x34] sm:$0xf]
      %v956 = vld [vmem:[%s5 + $0x38] sm:$0xf]
      %v957 = vld [vmem:[%s5 + $0x3c] sm:$0xf]
      %v958 = vld [vmem:[%s5 + $0x40] sm:$0xf]
      %v959 = vld [vmem:[%s5 + $0x44] sm:$0xf]
      %v960 = vld [vmem:[%s5 + $0x48] sm:$0xf]
      %v961 = vld [vmem:[%s5 + $0x4c] sm:$0xf]
      %v962 = vld [vmem:[%s5 + $0x50] sm:$0xf]
      %v963 = vld [vmem:[%s5 + $0x54] sm:$0xf]
      %v964 = vld [vmem:[%s5 + $0x58] sm:$0xf]
      %v965 = vld [vmem:[%s5 + $0x5c] sm:$0xf]
      %v966 = vld [vmem:[%s5 + $0x60] sm:$0xf]
      %v967 = vld [vmem:[%s5 + $0x64] sm:$0xf]
      %v968 = vld [vmem:[%s5 + $0x68] sm:$0xf]
      %v969 = vld [vmem:[%s5 + $0x6c] sm:$0xf]
      %v970 = vld [vmem:[%s5 + $0x70] sm:$0xf]
      %v971 = vld [vmem:[%s5 + $0x74] sm:$0xf]
      %v972 = vld [vmem:[%s5 + $0x78] sm:$0xf]
      %v973 = vld [vmem:[%s5 + $0x7c] sm:$0xf]
      %v974 = vld [vmem:[%s6] sm:$0x1]
      %v976 = vperm.slane %v974, 0
      %v1010 = vunpack.c.l.b16 %v942
      %v1011 = vunpack.c.l.b16 %v943
      %v1012 = vunpack.c.l.b16 %v944
      %v1013 = vunpack.c.l.b16 %v945
      %v1014 = vunpack.c.l.b16 %v946
      %v1015 = vunpack.c.l.b16 %v947
      %v1016 = vunpack.c.l.b16 %v948
      %v1017 = vunpack.c.l.b16 %v949
      %v1018 = vunpack.c.l.b16 %v950
      %v1019 = vunpack.c.l.b16 %v951
      %v1020 = vunpack.c.l.b16 %v952
      %v1021 = vunpack.c.l.b16 %v953
      %v1022 = vunpack.c.l.b16 %v954
      %v1023 = vunpack.c.l.b16 %v955
      %v1024 = vunpack.c.l.b16 %v956
      %v1025 = vunpack.c.l.b16 %v957
      %v1026 = vunpack.c.l.b16 %v958
      %v1027 = vunpack.c.l.b16 %v959
      %v1028 = vunpack.c.l.b16 %v960
      %v1029 = vunpack.c.l.b16 %v961
      %v1030 = vunpack.c.l.b16 %v962
      %v1031 = vunpack.c.l.b16 %v963
      %v1032 = vunpack.c.l.b16 %v964
      %v1033 = vunpack.c.l.b16 %v965
      %v1034 = vunpack.c.l.b16 %v966
      %v1035 = vunpack.c.l.b16 %v967
      %v1036 = vunpack.c.l.b16 %v968
      %v1037 = vunpack.c.l.b16 %v969
      %v1038 = vunpack.c.l.b16 %v970
      %v1039 = vunpack.c.l.b16 %v971
      %v1040 = vunpack.c.l.b16 %v972
      %v1041 = vunpack.c.l.b16 %v973
      %v1042 = vpack.c.b16 %v1011, %v1010
      %v1043 = vpack.c.b16 %v1013, %v1012
      %v1044 = vpack.c.b16 %v1015, %v1014
      %v1045 = vpack.c.b16 %v1017, %v1016
      %v1046 = vpack.c.b16 %v1019, %v1018
      %v1047 = vpack.c.b16 %v1021, %v1020
      %v1048 = vpack.c.b16 %v1023, %v1022
      %v1049 = vpack.c.b16 %v1025, %v1024
      %v1050 = vpack.c.b16 %v1027, %v1026
      %v1051 = vpack.c.b16 %v1029, %v1028
      %v1052 = vpack.c.b16 %v1031, %v1030
      %v1053 = vpack.c.b16 %v1033, %v1032
      %v1054 = vpack.c.b16 %v1035, %v1034
      %v1055 = vpack.c.b16 %v1037, %v1036
      %v1056 = vpack.c.b16 %v1039, %v1038
      %v1057 = vpack.c.b16 %v1041, %v1040
      %1074 = vmatpush.bf16.msra.mxu0 %v1049
      %1075 = vmatpush.bf16.msra.mxu0 %v1048
      %1076 = vmatpush.bf16.msra.mxu0 %v1047
      %1077 = vmatpush.bf16.msra.mxu0 %v1046
      %1078 = vmatpush.bf16.msra.mxu0 %v1045
      %1079 = vmatpush.bf16.msra.mxu0 %v1044
      %1080 = vmatpush.bf16.msra.mxu0 %v1043
      %1081 = vmatpush.bf16.msra.mxu0 %v1042
      %1082 = vmatmul.bf16.gmra.mxu0 %v940
      %v1083 = vpop.f32.mrf.mxu0
      %v1084 = vadd.f32 %v976, %v1083
      %v1085 = vpop.f32.mrf.mxu0
      %1086 = vdwg.mxu0
      %1087 = vmatpush.bf16.msra.mxu0 %v1057
      %1088 = vmatpush.bf16.msra.mxu0 %v1056
      %1089 = vmatpush.bf16.msra.mxu0 %v1055
      %1090 = vmatpush.bf16.msra.mxu0 %v1054
      %1091 = vmatpush.bf16.msra.mxu0 %v1053
      %1092 = vmatpush.bf16.msra.mxu0 %v1052
      %1093 = vmatpush.bf16.msra.mxu0 %v1051
      %1094 = vmatpush.bf16.msra.mxu0 %v1050
      %1095 = vmatmul.bf16.gmra.mxu0 %v941
      %v1096 = vpop.f32.mrf.mxu0
      %v1097 = vadd.f32 %v1084, %v1096
      %v1098 = vpop.f32.mrf.mxu0
      %1099 = vdwg.mxu0
      %v1100 = vmax.f32 %v1097, 0.0
      %v1101 = vpack.c.bf16 %v1100, %v1100
      %v1102 = vld [vmem:[%s7] sm:$0xf]
      %v1103 = vld [vmem:[%s7 + $0x4] sm:$0xf]
      %v1104 = vld [vmem:[%s7 + $0x8] sm:$0xf]
      %v1105 = vld [vmem:[%s7 + $0xc] sm:$0xf]
      %v1106 = vld [vmem:[%s7 + $0x10] sm:$0xf]
      %v1107 = vld [vmem:[%s7 + $0x14] sm:$0xf]
      %v1108 = vld [vmem:[%s7 + $0x18] sm:$0xf]
      %v1109 = vld [vmem:[%s7 + $0x1c] sm:$0xf]
      %v1110 = vld [vmem:[%s7 + $0x20] sm:$0xf]
      %v1111 = vld [vmem:[%s7 + $0x24] sm:$0xf]
      %v1112 = vld [vmem:[%s7 + $0x28] sm:$0xf]
      %v1113 = vld [vmem:[%s7 + $0x2c] sm:$0xf]
      %v1114 = vld [vmem:[%s7 + $0x30] sm:$0xf]
      %v1115 = vld [vmem:[%s7 + $0x34] sm:$0xf]
      %v1116 = vld [vmem:[%s7 + $0x38] sm:$0xf]
      %v1117 = vld [vmem:[%s7 + $0x3c] sm:$0xf]
      %v1118 = vld [vmem:[%s8] sm:$0x1]
      %v1120 = vperm.slane %v1118, 0
      %v1138 = vunpack.c.l.b16 %v1102
      %v1139 = vunpack.c.l.b16 %v1103
      %v1140 = vunpack.c.l.b16 %v1104
      %v1141 = vunpack.c.l.b16 %v1105
      %v1142 = vunpack.c.l.b16 %v1106
      %v1143 = vunpack.c.l.b16 %v1107
      %v1144 = vunpack.c.l.b16 %v1108
      %v1145 = vunpack.c.l.b16 %v1109
      %v1146 = vunpack.c.l.b16 %v1110
      %v1147 = vunpack.c.l.b16 %v1111
      %v1148 = vunpack.c.l.b16 %v1112
      %v1149 = vunpack.c.l.b16 %v1113
      %v1150 = vunpack.c.l.b16 %v1114
      %v1151 = vunpack.c.l.b16 %v1115
      %v1152 = vunpack.c.l.b16 %v1116
      %v1153 = vunpack.c.l.b16 %v1117
      %v1154 = vpack.c.b16 %v1139, %v1138
      %v1155 = vpack.c.b16 %v1141, %v1140
      %v1156 = vpack.c.b16 %v1143, %v1142
      %v1157 = vpack.c.b16 %v1145, %v1144
      %v1158 = vpack.c.b16 %v1147, %v1146
      %v1159 = vpack.c.b16 %v1149, %v1148
      %v1160 = vpack.c.b16 %v1151, %v1150
      %v1161 = vpack.c.b16 %v1153, %v1152
      %1170 = vmatpush.bf16.msra.mxu0 %v1161
      %1171 = vmatpush.bf16.msra.mxu0 %v1160
      %1172 = vmatpush.bf16.msra.mxu0 %v1159
      %1173 = vmatpush.bf16.msra.mxu0 %v1158
      %1174 = vmatpush.bf16.msra.mxu0 %v1157
      %1175 = vmatpush.bf16.msra.mxu0 %v1156
      %1176 = vmatpush.bf16.msra.mxu0 %v1155
      %1177 = vmatpush.bf16.msra.mxu0 %v1154
      %1178 = vmatmul.bf16.gmra.mxu0 %v1101
      %v1179 = vpop.f32.mrf.mxu0
      %v1180 = vadd.f32 %v1120, %v1179
      %v1181 = vpop.f32.mrf.mxu0
      %1182 = vdwg.mxu0
      %1183 = vst [vmem:[#allocation3] sm:$0xff] %v1180
    $region45: #{_audio_only_impl.1} parent=1 // pred_fallthru
      _
    // Predicated region
    $region46: #{_audio_only_impl.1} parent=1 // pred_check
      _
    $region47: #{_audio_only_impl.1} parent=1 // pred_check_branch
      %1185 = sbr.rel (0) target = $region49
    $region48: #{_audio_only_impl.1} parent=1 // pred_region
      %1187 = vsyncadd [#allocation4], 0
      %s1189 = sshll.u32 [#allocation3], 4
      %s1190 = int_to_ptr.vmem [resolvable:$true] %s1189
      %s1191 = sshll.u32 %s9, 4
      %s1192 = int_to_ptr.hbm [resolvable:$true] %s1191
      %1194 = dma.vmem_to_hbm [thread:$0]  %s1190, 128, %s1192, [#allocation4]
    $region49: #{_audio_only_impl.1} parent=1 // pred_fallthru
      _
    // Predicated region
    $region50: #{_audio_only_impl.1} parent=1 // pred_check
      _
    $region51: #{_audio_only_impl.1} parent=1 // pred_check_branch
      %1196 = sbr.rel (0) target = $region53
    $region52: #{_audio_only_impl.1} parent=1 // pred_region
      %1198 = dma.done [#allocation4], 128
    $region53: #{_audio_only_impl.1} parent=1 // pred_fallthru
      _
    %1199 = vsyncpa [#allocation4], 1

</llo_original>
